<compile_context>
chip_gen: v6e
topology: v6e:2x2x1
jax: 0.10.0
libtpu: 0.0.40
codegen_flags: <defaults>
</compile_context>

<pallas_src>
import functools

import jax
import jax.numpy as jnp
from jax import lax
from jax.experimental import pallas as pl
from jax.experimental.pallas import tpu as pltpu


# ----------------------------------------------------------------------------
# Kernel 1: im2col Conv1d + GroupNorm + ReLU + fused biLSTM input projection.
# One batch-block (Bb batch elements) per grid step; B*T folded into matmul M.
# ----------------------------------------------------------------------------
def conv_gn_proj_kernel(x_ref, wc_ref, bc_ref, gamma_ref, beta_ref, gavg_ref,
                        wih_ref, bih_ref, o_ref, *, T, Bb, eps=1e-5,
                        compute_dtype=jnp.float32):
    # x_ref:    (Bb, T, K*Cin)   im2col windows
    # wc_ref:   (K*Cin, H)       folded conv weight
    # bc/gamma/beta: (1, H)
    # gavg_ref: (H, H)           group-average operator (same-group / (T*cg))
    # wih_ref:  (H, 8N)          packed LSTM input weights (both directions)
    # bih_ref:  (1, 8N)          packed LSTM bias (b_ih + b_hh, both directions)
    # o_ref:    (Bb, T, 8N)      gate pre-activations from x (lane-dense, 8N = 128)
    KC = wc_ref.shape[0]
    G8 = wih_ref.shape[1]

    # ---- conv as one big matmul: (Bb*T, KC) x (KC, H) ----
    x2d = x_ref[...].reshape(Bb * T, KC)          # tile-aligned collapse (T % 8 == 0)
    acc = jnp.dot(x2d.astype(compute_dtype), wc_ref[...].astype(compute_dtype),
                  preferred_element_type=jnp.float32) + bc_ref[...]   # (Bb*T, H)

    gavg = gavg_ref[...]
    gamma = gamma_ref[...]
    beta = beta_ref[...]

    # ---- GroupNorm (per batch element, over time x channels-in-group) + ReLU ----
    h_parts = []
    for b in range(Bb):                           # static, tile-aligned slices
        a = acc[b * T:(b + 1) * T, :]             # (T, H)
        mean_c = jnp.dot(jnp.sum(a, axis=0, keepdims=True), gavg,
                         preferred_element_type=jnp.float32)          # (1, H)
        dev = a - mean_c
        var_c = jnp.dot(jnp.sum(dev * dev, axis=0, keepdims=True), gavg,
                        preferred_element_type=jnp.float32)           # (1, H) two-pass var
        normed = dev * lax.rsqrt(var_c + eps)
        h_parts.append(jnp.maximum(normed * gamma + beta, 0.0))
    h_all = h_parts[0] if Bb == 1 else jnp.concatenate(h_parts, axis=0)  # (Bb*T, H)

    # ---- hoisted biLSTM input projection: one lane-dense (Bb*T, H) x (H, 8N) ----
    gx = jnp.dot(h_all.astype(compute_dtype), wih_ref[...].astype(compute_dtype),
                 preferred_element_type=jnp.float32) + bih_ref[...]   # (Bb*T, 8N)
    o_ref[...] = gx.reshape(Bb, T, G8)


# ----------------------------------------------------------------------------
# Kernel 2: fused bidirectional LSTM recurrence.
# Gate lane layout (8N = 128 lanes): [i_f | i_b | f_f | f_b | g_f | g_b | o_f | o_b]
# State layout (2N lanes):           h = [h_f | h_b], c = [c_f | c_b]
# ----------------------------------------------------------------------------
def bilstm_fused_kernel(gx_ref, whh_ref, out_f_ref, out_b_ref, *, T, B, N):
    # gx_ref:  (T, B, 8N) precomputed x-projection + bias (time-major)
    # whh_ref: (2N, 8N)   block-diagonal packed recurrent weights
    # out_f_ref / out_b_ref: (T, B, N)
    G8 = 8 * N
    twoN = 2 * N
    whh = whh_ref[...]                                            # hoisted load

    lane = lax.broadcasted_iota(jnp.int32, (B, G8), 1)
    fwd_mask = ((lane // N) % 2) == 0          # forward-direction lanes
    tanh_mask = (lane // twoN) == 2            # "g" gate lanes

    def step(t, carry):
        h, c = carry                                              # (B, 2N) each
        rt = T - 1 - t
        gx_t = gx_ref[t]                                          # (B, 8N)
        gx_r = gx_ref[rt]                                         # (B, 8N)
        gates = jnp.where(fwd_mask, gx_t, gx_r) + jnp.dot(
            h, whh, preferred_element_type=jnp.float32)           # (B, 8N), lane-dense
        acts = jnp.where(tanh_mask, jnp.tanh(gates), jax.nn.sigmoid(gates))
        i_g = acts[:, 0 * twoN:1 * twoN]
        f_g = acts[:, 1 * twoN:2 * twoN]
        g_g = acts[:, 2 * twoN:3 * twoN]
        o_g = acts[:, 3 * twoN:4 * twoN]
        c_new = f_g * c + i_g * g_g
        h_new = o_g * jnp.tanh(c_new)
        out_f_ref[t] = h_new[:, :N]            # forward hidden at time t
        out_b_ref[rt] = h_new[:, N:]           # backward hidden at time T-1-t
        return h_new, c_new

    h0 = jnp.zeros((B, twoN), jnp.float32)
    c0 = jnp.zeros((B, twoN), jnp.float32)
    lax.fori_loop(0, T, step, (h0, c0))


# ----------------------------------------------------------------------------
# Wrapper
# ----------------------------------------------------------------------------
def rhythm_encoder_forward(x, params, *, freq=1, groups=4, padding=2,
                           mask=None, mxu_dtype=jnp.float32):
    B, T, Cin = x.shape
    W = params["conv_w"]                      # (K, Cin, H)
    K, _, H = W.shape
    N = params["wih_f"].shape[1] // 4
    G8 = 8 * N
    cg = H // groups
    assert T % 8 == 0, "T must be a multiple of 8 (tile-aligned batch fold)"

    # ---- im2col outside the kernel (removes in-kernel sublane-misaligned slices) ----
    x_pad = jnp.pad(x, ((0, 0), (padding, padding), (0, 0)))
    x_win = jnp.concatenate([x_pad[:, k:k + T, :] for k in range(K)], axis=-1)
    w_fold = W.reshape(K * Cin, H)

    # ---- hoisted GroupNorm group-average operator (H, H) ----
    cid = jnp.arange(H) // cg
    same_group = (cid[:, None] == cid[None, :]).astype(jnp.float32)
    gavg = same_group / jnp.float32(T * cg)

    # ---- pack biLSTM weights: lanes [i_f|i_b|f_f|f_b|g_f|g_b|o_f|o_b] ----
    def pack(wf, wb):
        return jnp.concatenate(
            [w[..., g * N:(g + 1) * N] for g in range(4) for w in (wf, wb)],
            axis=-1)

    wih_p = pack(params["wih_f"], params["wih_b"])                 # (H, 8N)
    b_p = pack(params["b_f"], params["b_b"])                       # (1, 8N)
    zf = jnp.zeros_like(params["whh_f"])
    zb = jnp.zeros_like(params["whh_b"])
    whh_p = jnp.concatenate([pack(params["whh_f"], zb),
                             pack(zf, params["whh_b"])], axis=0)   # (2N, 8N) block-diag

    # ---- Kernel 1: conv + GN + ReLU + fused input projection ----
    Bb = B if B <= 8 else 8
    assert B % Bb == 0
    gx = pl.pallas_call(
        functools.partial(conv_gn_proj_kernel, T=T, Bb=Bb,
                          compute_dtype=mxu_dtype),
        out_shape=jax.ShapeDtypeStruct((B, T, G8), jnp.float32),
        grid=(B // Bb,),
        in_specs=[
            pl.BlockSpec((Bb, T, K * Cin), lambda b: (b, 0, 0)),
            pl.BlockSpec((K * Cin, H), lambda b: (0, 0)),
            pl.BlockSpec((1, H), lambda b: (0, 0)),
            pl.BlockSpec((1, H), lambda b: (0, 0)),
            pl.BlockSpec((1, H), lambda b: (0, 0)),
            pl.BlockSpec((H, H), lambda b: (0, 0)),
            pl.BlockSpec((H, G8), lambda b: (0, 0)),
            pl.BlockSpec((1, G8), lambda b: (0, 0)),
        ],
        out_specs=pl.BlockSpec((Bb, T, G8), lambda b: (b, 0, 0)),
        compiler_params=pltpu.CompilerParams(
            dimension_semantics=("parallel",)),
    )(x_win, w_fold, params["conv_b"], params["gn_gamma"], params["gn_beta"],
      gavg, wih_p, b_p)

    # Single remaining full-tensor layout change (handled by XLA, proven lowering);
    # the recurrence kernel then uses only leading-dim dynamic indexing.
    gx_tm = jnp.transpose(gx, (1, 0, 2))                           # (T, B, 8N)

    # ---- Kernel 2: fused bidirectional recurrence ----
    out_f_tm, out_b_tm = pl.pallas_call(
        functools.partial(bilstm_fused_kernel, T=T, B=B, N=N),
        out_shape=(jax.ShapeDtypeStruct((T, B, N), jnp.float32),
                   jax.ShapeDtypeStruct((T, B, N), jnp.float32)),
        grid=(1,),
        in_specs=[
            pl.BlockSpec((T, B, G8), lambda i: (0, 0, 0)),
            pl.BlockSpec((2 * N, G8), lambda i: (0, 0)),
        ],
        out_specs=[
            pl.BlockSpec((T, B, N), lambda i: (0, 0, 0)),
            pl.BlockSpec((T, B, N), lambda i: (0, 0, 0)),
        ],
        compiler_params=pltpu.CompilerParams(
            dimension_semantics=("arbitrary",)),
    )(gx_tm, whh_p)

    if mask is not None:                       # mask: (B, T, 1)
        m_tm = jnp.transpose(mask, (1, 0, 2))
        out_f_tm = out_f_tm * m_tm
        out_b_tm = out_b_tm * m_tm

    # freq slicing on the time-major outputs; only the small sliced result is transposed
    codes_tm = jnp.concatenate([out_f_tm[freq - 1::freq],
                                out_b_tm[::freq]], axis=-1)        # (T//freq, B, 2N)
    return jnp.transpose(codes_tm, (1, 0, 2))                      # (B, T//freq, 2N)


# ----------------------------------------------------------------------------
# Pure-JAX reference (same math) for a correctness sanity check
# ----------------------------------------------------------------------------
def reference_forward(x, params, *, freq=1, groups=4, padding=2):
    W = params["conv_w"]; K, Cin, H = W.shape
    B, T, _ = x.shape
    N = params["wih_f"].shape[1] // 4
    x_pad = jnp.pad(x, ((0, 0), (padding, padding), (0, 0)))
    acc = jnp.zeros((B, T, H), jnp.float32)
    for k in range(K):
        acc = acc + jnp.einsum("btc,ch->bth", x_pad[:, k:k + T, :], W[k],
                               preferred_element_type=jnp.float32)
    acc = acc + params["conv_b"][0]
    cg = H // groups
    a = acc.reshape(B, T, groups, cg)
    mean = a.mean(axis=(1, 3), keepdims=True)
    var = a.var(axis=(1, 3), keepdims=True)
    normed = ((a - mean) / jnp.sqrt(var + 1e-5)).reshape(B, T, H)
    h = jax.nn.relu(normed * params["gn_gamma"][0] + params["gn_beta"][0])

    def lstm_dir(xs, wih, whh, b, reverse):
        xs_tm = jnp.transpose(xs, (1, 0, 2))
        if reverse:
            xs_tm = xs_tm[::-1]

        def step(carry, x_t):
            hh, cc = carry
            gates = x_t @ wih + hh @ whh + b
            i_g = jax.nn.sigmoid(gates[:, 0 * N:1 * N])
            f_g = jax.nn.sigmoid(gates[:, 1 * N:2 * N])
            g_g = jnp.tanh(gates[:, 2 * N:3 * N])
            o_g = jax.nn.sigmoid(gates[:, 3 * N:4 * N])
            cc = f_g * cc + i_g * g_g
            hh = o_g * jnp.tanh(cc)
            return (hh, cc), hh

        h0 = jnp.zeros((B, N), jnp.float32)
        (_, _), hs = lax.scan(step, (h0, h0), xs_tm)
        if reverse:
            hs = hs[::-1]
        return jnp.transpose(hs, (1, 0, 2))

    out_f = lstm_dir(h, params["wih_f"], params["whh_f"], params["b_f"][0], False)
    out_b = lstm_dir(h, params["wih_b"], params["whh_b"], params["b_b"][0], True)
    return jnp.concatenate(
        [out_f[:, freq - 1::freq, :], out_b[:, ::freq, :]], axis=-1)


# ----------------------------------------------------------------------------
# Main
# ----------------------------------------------------------------------------
if __name__ == "__main__":
    # hparams['gn_chs_grp'] -> chs_grp = 8
    B, T = 2, 16
    inp_size, hidden_size, neck_size = 8, 32, 16      # 8*neck = 128 lanes (lane-dense)
    chs_grp = 8
    groups = hidden_size // chs_grp                   # 4
    K, freq = 5, 1

    key = jax.random.PRNGKey(0)
    keys = jax.random.split(key, 12)
    scale = 0.1
    params = {
        "conv_w":  scale * jax.random.normal(keys[0], (K, inp_size, hidden_size), jnp.float32),
        "conv_b":  scale * jax.random.normal(keys[1], (1, hidden_size), jnp.float32),
        "gn_gamma": 1.0 + scale * jax.random.normal(keys[2], (1, hidden_size), jnp.float32),
        "gn_beta":  scale * jax.random.normal(keys[3], (1, hidden_size), jnp.float32),
        # LSTM weights stored transposed vs. PyTorch: (in, 4N) so x @ W works.
        # Combined bias = b_ih + b_hh. Gate order i, f, g, o (PyTorch).
        "wih_f": scale * jax.random.normal(keys[4], (hidden_size, 4 * neck_size), jnp.float32),
        "whh_f": scale * jax.random.normal(keys[5], (neck_size, 4 * neck_size), jnp.float32),
        "b_f":   scale * jax.random.normal(keys[6], (1, 4 * neck_size), jnp.float32),
        "wih_b": scale * jax.random.normal(keys[7], (hidden_size, 4 * neck_size), jnp.float32),
        "whh_b": scale * jax.random.normal(keys[8], (neck_size, 4 * neck_size), jnp.float32),
        "b_b":   scale * jax.random.normal(keys[9], (1, 4 * neck_size), jnp.float32),
    }

    x = jax.random.normal(keys[10], (B, T, inp_size), jnp.float32)

    # mxu_dtype=jnp.bfloat16 is the v6e/v7x MXU knob; keep f32 here for an exact check.
    codes = rhythm_encoder_forward(x, params, freq=freq, groups=groups,
                                   padding=2, mxu_dtype=jnp.float32)
    codes = jax.block_until_ready(codes)

    assert codes.shape == (B, T // freq, 2 * neck_size), codes.shape

    ref = jax.block_until_ready(reference_forward(x, params, freq=freq, groups=groups))
    assert jnp.all(jnp.isfinite(codes))
    assert jnp.allclose(codes, ref, atol=1e-2, rtol=1e-2)

    print("KERNEL_OK")
</pallas_src>

<mosaic_0001>
module attributes {stable_mosaic.version = 11 : i64} {
  func.func @conv_gn_proj_kernel(%arg0: i32, %arg1: memref<2x16x40xf32, #tpu.memory_space<vmem>>, %arg2: memref<40x32xf32, #tpu.memory_space<vmem>>, %arg3: memref<1x32xf32, #tpu.memory_space<vmem>>, %arg4: memref<1x32xf32, #tpu.memory_space<vmem>>, %arg5: memref<1x32xf32, #tpu.memory_space<vmem>>, %arg6: memref<32x32xf32, #tpu.memory_space<vmem>>, %arg7: memref<32x128xf32, #tpu.memory_space<vmem>>, %arg8: memref<1x128xf32, #tpu.memory_space<vmem>>, %arg9: memref<2x16x128xf32, #tpu.memory_space<vmem>>) attributes {dimension_semantics = [#tpu.dimension_semantics<parallel>], iteration_bounds = array<i64: 1>, scalar_prefetch = 0 : i64, scratch_operands = 0 : i64, tpu.core_type = #tpu.core_type<tc>, window_params = [{transform_indices = @transform_0, window_bounds = array<i64: 2, 16, 40>}, {pipeline_mode = #tpu.pipeline_mode<synchronous>, transform_indices = @transform_1, window_bounds = array<i64: 40, 32>}, {pipeline_mode = #tpu.pipeline_mode<synchronous>, transform_indices = @transform_2, window_bounds = array<i64: 1, 32>}, {pipeline_mode = #tpu.pipeline_mode<synchronous>, transform_indices = @transform_3, window_bounds = array<i64: 1, 32>}, {pipeline_mode = #tpu.pipeline_mode<synchronous>, transform_indices = @transform_4, window_bounds = array<i64: 1, 32>}, {pipeline_mode = #tpu.pipeline_mode<synchronous>, transform_indices = @transform_5, window_bounds = array<i64: 32, 32>}, {pipeline_mode = #tpu.pipeline_mode<synchronous>, transform_indices = @transform_6, window_bounds = array<i64: 32, 128>}, {pipeline_mode = #tpu.pipeline_mode<synchronous>, transform_indices = @transform_7, window_bounds = array<i64: 1, 128>}, {transform_indices = @transform_8, window_bounds = array<i64: 2, 16, 128>}]} {
    %c0 = arith.constant 0 : index
    %c0_0 = arith.constant 0 : index
    %c0_1 = arith.constant 0 : index
    %0 = vector.load %arg1[%c0, %c0_0, %c0_1] : memref<2x16x40xf32, #tpu.memory_space<vmem>>, vector<2x16x40xf32>
    %1 = vector.shape_cast %0 : vector<2x16x40xf32> to vector<32x40xf32>
    %c0_2 = arith.constant 0 : index
    %c0_3 = arith.constant 0 : index
    %2 = vector.load %arg2[%c0_2, %c0_3] : memref<40x32xf32, #tpu.memory_space<vmem>>, vector<40x32xf32>
    %cst = arith.constant dense<0.000000e+00> : vector<32x32xf32>
    %3 = tpu.matmul %1, %2, %cst {dimension_numbers = #tpu.dot_dimension_numbers<[1], [0], [0], [1], [0, 0, 1, 1], [], []>} : vector<32x40xf32>, vector<40x32xf32>, vector<32x32xf32> -> vector<32x32xf32>
    %c0_4 = arith.constant 0 : index
    %c0_5 = arith.constant 0 : index
    %4 = vector.load %arg3[%c0_4, %c0_5] : memref<1x32xf32, #tpu.memory_space<vmem>>, vector<1x32xf32>
    %5 = vector.broadcast %4 : vector<1x32xf32> to vector<32x32xf32>
    %6 = arith.addf %3, %5 : vector<32x32xf32>
    %c0_6 = arith.constant 0 : index
    %c0_7 = arith.constant 0 : index
    %7 = vector.load %arg6[%c0_6, %c0_7] : memref<32x32xf32, #tpu.memory_space<vmem>>, vector<32x32xf32>
    %c0_8 = arith.constant 0 : index
    %c0_9 = arith.constant 0 : index
    %8 = vector.load %arg4[%c0_8, %c0_9] : memref<1x32xf32, #tpu.memory_space<vmem>>, vector<1x32xf32>
    %c0_10 = arith.constant 0 : index
    %c0_11 = arith.constant 0 : index
    %9 = vector.load %arg5[%c0_10, %c0_11] : memref<1x32xf32, #tpu.memory_space<vmem>>, vector<1x32xf32>
    %10 = vector.extract_strided_slice %6 {offsets = [0, 0], sizes = [16, 32], strides = [1, 1]} : vector<32x32xf32> to vector<16x32xf32>
    %cst_12 = arith.constant dense<0.000000e+00> : vector<32xf32>
    %11 = vector.multi_reduction <add>, %10, %cst_12 [0] : vector<16x32xf32> to vector<32xf32>
    %12 = vector.shape_cast %11 : vector<32xf32> to vector<1x32xf32>
    %cst_13 = arith.constant dense<0.000000e+00> : vector<1x32xf32>
    %13 = tpu.matmul %12, %7, %cst_13 {dimension_numbers = #tpu.dot_dimension_numbers<[1], [0], [0], [1], [0, 0, 1, 1], [], []>} : vector<1x32xf32>, vector<32x32xf32>, vector<1x32xf32> -> vector<1x32xf32>
    %14 = vector.broadcast %13 : vector<1x32xf32> to vector<16x32xf32>
    %15 = arith.subf %10, %14 : vector<16x32xf32>
    %16 = arith.mulf %15, %15 : vector<16x32xf32>
    %cst_14 = arith.constant dense<0.000000e+00> : vector<32xf32>
    %17 = vector.multi_reduction <add>, %16, %cst_14 [0] : vector<16x32xf32> to vector<32xf32>
    %18 = vector.shape_cast %17 : vector<32xf32> to vector<1x32xf32>
    %cst_15 = arith.constant dense<0.000000e+00> : vector<1x32xf32>
    %19 = tpu.matmul %18, %7, %cst_15 {dimension_numbers = #tpu.dot_dimension_numbers<[1], [0], [0], [1], [0, 0, 1, 1], [], []>} : vector<1x32xf32>, vector<32x32xf32>, vector<1x32xf32> -> vector<1x32xf32>
    %cst_16 = arith.constant 9.99999974E-6 : f32
    %20 = vector.broadcast %cst_16 : f32 to vector<1x32xf32>
    %21 = arith.addf %19, %20 : vector<1x32xf32>
    %22 = math.rsqrt %21 : vector<1x32xf32>
    %23 = vector.broadcast %22 : vector<1x32xf32> to vector<16x32xf32>
    %24 = arith.mulf %15, %23 : vector<16x32xf32>
    %25 = vector.broadcast %8 : vector<1x32xf32> to vector<16x32xf32>
    %26 = arith.mulf %24, %25 : vector<16x32xf32>
    %27 = vector.broadcast %9 : vector<1x32xf32> to vector<16x32xf32>
    %28 = arith.addf %26, %27 : vector<16x32xf32>
    %cst_17 = arith.constant 0.000000e+00 : f32
    %29 = vector.broadcast %cst_17 : f32 to vector<16x32xf32>
    %30 = arith.maximumf %28, %29 : vector<16x32xf32>
    %31 = vector.extract_strided_slice %6 {offsets = [16, 0], sizes = [16, 32], strides = [1, 1]} : vector<32x32xf32> to vector<16x32xf32>
    %cst_18 = arith.constant dense<0.000000e+00> : vector<32xf32>
    %32 = vector.multi_reduction <add>, %31, %cst_18 [0] : vector<16x32xf32> to vector<32xf32>
    %33 = vector.shape_cast %32 : vector<32xf32> to vector<1x32xf32>
    %cst_19 = arith.constant dense<0.000000e+00> : vector<1x32xf32>
    %34 = tpu.matmul %33, %7, %cst_19 {dimension_numbers = #tpu.dot_dimension_numbers<[1], [0], [0], [1], [0, 0, 1, 1], [], []>} : vector<1x32xf32>, vector<32x32xf32>, vector<1x32xf32> -> vector<1x32xf32>
    %35 = vector.broadcast %34 : vector<1x32xf32> to vector<16x32xf32>
    %36 = arith.subf %31, %35 : vector<16x32xf32>
    %37 = arith.mulf %36, %36 : vector<16x32xf32>
    %cst_20 = arith.constant dense<0.000000e+00> : vector<32xf32>
    %38 = vector.multi_reduction <add>, %37, %cst_20 [0] : vector<16x32xf32> to vector<32xf32>
    %39 = vector.shape_cast %38 : vector<32xf32> to vector<1x32xf32>
    %cst_21 = arith.constant dense<0.000000e+00> : vector<1x32xf32>
    %40 = tpu.matmul %39, %7, %cst_21 {dimension_numbers = #tpu.dot_dimension_numbers<[1], [0], [0], [1], [0, 0, 1, 1], [], []>} : vector<1x32xf32>, vector<32x32xf32>, vector<1x32xf32> -> vector<1x32xf32>
    %cst_22 = arith.constant 9.99999974E-6 : f32
    %41 = vector.broadcast %cst_22 : f32 to vector<1x32xf32>
    %42 = arith.addf %40, %41 : vector<1x32xf32>
    %43 = math.rsqrt %42 : vector<1x32xf32>
    %44 = vector.broadcast %43 : vector<1x32xf32> to vector<16x32xf32>
    %45 = arith.mulf %36, %44 : vector<16x32xf32>
    %46 = vector.broadcast %8 : vector<1x32xf32> to vector<16x32xf32>
    %47 = arith.mulf %45, %46 : vector<16x32xf32>
    %48 = vector.broadcast %9 : vector<1x32xf32> to vector<16x32xf32>
    %49 = arith.addf %47, %48 : vector<16x32xf32>
    %cst_23 = arith.constant 0.000000e+00 : f32
    %50 = vector.broadcast %cst_23 : f32 to vector<16x32xf32>
    %51 = arith.maximumf %49, %50 : vector<16x32xf32>
    %52 = tpu.concatenate %30, %51 in 0 : vector<16x32xf32>, vector<16x32xf32> -> vector<32x32xf32>
    %c0_24 = arith.constant 0 : index
    %c0_25 = arith.constant 0 : index
    %53 = vector.load %arg7[%c0_24, %c0_25] : memref<32x128xf32, #tpu.memory_space<vmem>>, vector<32x128xf32>
    %cst_26 = arith.constant dense<0.000000e+00> : vector<32x128xf32>
    %54 = tpu.matmul %52, %53, %cst_26 {dimension_numbers = #tpu.dot_dimension_numbers<[1], [0], [0], [1], [0, 0, 1, 1], [], []>} : vector<32x32xf32>, vector<32x128xf32>, vector<32x128xf32> -> vector<32x128xf32>
    %c0_27 = arith.constant 0 : index
    %c0_28 = arith.constant 0 : index
    %55 = vector.load %arg8[%c0_27, %c0_28] : memref<1x128xf32, #tpu.memory_space<vmem>>, vector<1x128xf32>
    %56 = vector.broadcast %55 : vector<1x128xf32> to vector<32x128xf32>
    %57 = arith.addf %54, %56 : vector<32x128xf32>
    %58 = vector.shape_cast %57 : vector<32x128xf32> to vector<2x16x128xf32>
    %c0_29 = arith.constant 0 : index
    %c0_30 = arith.constant 0 : index
    %c0_31 = arith.constant 0 : index
    %59 = vector.load %arg9[%c0_29, %c0_30, %c0_31] : memref<2x16x128xf32, #tpu.memory_space<vmem>>, vector<2x16x128xf32>
    tpu.vector_store %arg9[%c0_29, %c0_30, %c0_31], %58 {strides = array<i32>} : memref<2x16x128xf32, #tpu.memory_space<vmem>>, vector<2x16x128xf32>,
    return
  }
  func.func @transform_0(%arg0: i32) -> (i32, i32, i32) {
    %c0_i32 = arith.constant 0 : i32
    %c0_i32_0 = arith.constant 0 : i32
    %c0_i32_1 = arith.constant 0 : i32
    return %arg0, %c0_i32, %c0_i32_0 : i32, i32, i32
  }
  func.func @transform_1(%arg0: i32) -> (i32, i32) {
    %c0_i32 = arith.constant 0 : i32
    %c0_i32_0 = arith.constant 0 : i32
    %c0_i32_1 = arith.constant 0 : i32
    return %c0_i32, %c0_i32_0 : i32, i32
  }
  func.func @transform_2(%arg0: i32) -> (i32, i32) {
    %c0_i32 = arith.constant 0 : i32
    %c0_i32_0 = arith.constant 0 : i32
    %c0_i32_1 = arith.constant 0 : i32
    return %c0_i32, %c0_i32_0 : i32, i32
  }
  func.func @transform_3(%arg0: i32) -> (i32, i32) {
    %c0_i32 = arith.constant 0 : i32
    %c0_i32_0 = arith.constant 0 : i32
    %c0_i32_1 = arith.constant 0 : i32
    return %c0_i32, %c0_i32_0 : i32, i32
  }
  func.func @transform_4(%arg0: i32) -> (i32, i32) {
    %c0_i32 = arith.constant 0 : i32
    %c0_i32_0 = arith.constant 0 : i32
    %c0_i32_1 = arith.constant 0 : i32
    return %c0_i32, %c0_i32_0 : i32, i32
  }
  func.func @transform_5(%arg0: i32) -> (i32, i32) {
    %c0_i32 = arith.constant 0 : i32
    %c0_i32_0 = arith.constant 0 : i32
    %c0_i32_1 = arith.constant 0 : i32
    return %c0_i32, %c0_i32_0 : i32, i32
  }
  func.func @transform_6(%arg0: i32) -> (i32, i32) {
    %c0_i32 = arith.constant 0 : i32
    %c0_i32_0 = arith.constant 0 : i32
    %c0_i32_1 = arith.constant 0 : i32
    return %c0_i32, %c0_i32_0 : i32, i32
  }
  func.func @transform_7(%arg0: i32) -> (i32, i32) {
    %c0_i32 = arith.constant 0 : i32
    %c0_i32_0 = arith.constant 0 : i32
    %c0_i32_1 = arith.constant 0 : i32
    return %c0_i32, %c0_i32_0 : i32, i32
  }
  func.func @transform_8(%arg0: i32) -> (i32, i32, i32) {
    %c0_i32 = arith.constant 0 : i32
    %c0_i32_0 = arith.constant 0 : i32
    %c0_i32_1 = arith.constant 0 : i32
    return %arg0, %c0_i32, %c0_i32_0 : i32, i32, i32
  }
}

</mosaic_0001>

<llo_original>
// kernel: tpu_custom_call.1
$region0: #{tpu_custom_call.1}
  #allocation0 [shape = 'u32[]', space=smem, size = 0x4, offset = 0x4, fixed_abs, tag = 'smem constant byte address 0x4 - core index']
  #allocation1 [shape = 'u32[144,128]{1,0:T(1,128)}', space=vmem, size = 0x12000, scoped, tag = 'internal scratch']
  %s0 = inlined_call_operand.vmem [shape: f32[2,16,40], index: 0, kind: input, shape index: {}]
  %s1 = inlined_call_operand.vmem [shape: f32[40,32], index: 1, kind: input, shape index: {}]
  %s2 = inlined_call_operand.vmem [shape: f32[1,32], index: 2, kind: input, shape index: {}]
  %s3 = inlined_call_operand.vmem [shape: f32[1,32], index: 3, kind: input, shape index: {}]
  %s4 = inlined_call_operand.vmem [shape: f32[1,32], index: 4, kind: input, shape index: {}]
  %s5 = inlined_call_operand.vmem [shape: f32[32,32], index: 5, kind: input, shape index: {}]
  %s6 = inlined_call_operand.hbm [shape: f32[32,128], index: 6, kind: input, shape index: {}]
  %s7 = inlined_call_operand.vmem [shape: f32[1,128], index: 7, kind: input, shape index: {}]
  %s8 = inlined_call_operand.hbm [shape: f32[2,16,128], index: 8, kind: output, shape index: {}]
  %s9 = sld [smem:[#allocation0]]
  $region46: #{tpu_custom_call.1} parent=0
    _
  %s11 = ssub.s32 1, %s9
  %s12 = scalar_select 0, %s11, %s9
  $region1: #{tpu_custom_call.1} parent=0
    #allocation2 [shape = 'u8[16384]{0}', space=vmem, size = 0x4000, scoped, tag = 'input window, operand 6, single buffered']
    #allocation3 [shape = 's32[1]{0}', space=sflag, size = 0x4, scoped, tag = 'scoped memory for tpu_custom_call.1']
    #allocation4 [shape = 's32[1]{0}', space=sflag, size = 0x4, scoped, tag = 'scoped memory for tpu_custom_call.1']
    #allocation5 [shape = 'u8[16384]{0}', space=vmem, size = 0x4000, scoped, tag = 'output window, operand 0, single buffered']
    %13 = vsyncpa [#allocation3], 0
    %14 = vsyncpa [#allocation4], 0
    // Predicated region
    $region2: #{tpu_custom_call.1} parent=1 // pred_check
      _
    $region3: #{tpu_custom_call.1} parent=1 // pred_check_branch
      %16 = sbr.rel (0) target = $region5
    $region4: #{tpu_custom_call.1} parent=1 // pred_region
      _
    $region5: #{tpu_custom_call.1} parent=1 // pred_fallthru
      _
    // Predicated region
    $region6: #{tpu_custom_call.1} parent=1 // pred_check
      _
    $region7: #{tpu_custom_call.1} parent=1 // pred_check_branch
      %18 = sbr.rel (0) target = $region9
    $region8: #{tpu_custom_call.1} parent=1 // pred_region
      _
    $region9: #{tpu_custom_call.1} parent=1 // pred_fallthru
      _
    // Predicated region
    $region10: #{tpu_custom_call.1} parent=1 // pred_check
      _
    $region11: #{tpu_custom_call.1} parent=1 // pred_check_branch
      %20 = sbr.rel (0) target = $region13
    $region12: #{tpu_custom_call.1} parent=1 // pred_region
      _
    $region13: #{tpu_custom_call.1} parent=1 // pred_fallthru
      _
    // Predicated region
    $region14: #{tpu_custom_call.1} parent=1 // pred_check
      _
    $region15: #{tpu_custom_call.1} parent=1 // pred_check_branch
      %22 = sbr.rel (0) target = $region17
    $region16: #{tpu_custom_call.1} parent=1 // pred_region
      _
    $region17: #{tpu_custom_call.1} parent=1 // pred_fallthru
      _
    // Predicated region
    $region18: #{tpu_custom_call.1} parent=1 // pred_check
      _
    $region19: #{tpu_custom_call.1} parent=1 // pred_check_branch
      %24 = sbr.rel (0) target = $region21
    $region20: #{tpu_custom_call.1} parent=1 // pred_region
      _
    $region21: #{tpu_custom_call.1} parent=1 // pred_fallthru
      _
    // Predicated region
    $region22: #{tpu_custom_call.1} parent=1 // pred_check
      _
    $region23: #{tpu_custom_call.1} parent=1 // pred_check_branch
      %26 = sbr.rel (0) target = $region25
    $region24: #{tpu_custom_call.1} parent=1 // pred_region
      _
    $region25: #{tpu_custom_call.1} parent=1 // pred_fallthru
      _
    // Predicated region
    $region26: #{tpu_custom_call.1} parent=1 // pred_check
      _
    $region27: #{tpu_custom_call.1} parent=1 // pred_check_branch
      %28 = sbr.rel (0) target = $region29
    $region28: #{tpu_custom_call.1} parent=1 // pred_region
      %s30 = ssub.s32 512, 512
      %31 = vsyncadd [#allocation3], %s30
      %s32 = sshll.u32 [#allocation2], 4
      %s33 = int_to_ptr.vmem [resolvable:$true] %s32
      %38 = dma.hbm_to_vmem [thread:$0]  %s6, 512, %s33, [#allocation3], 128, 128, 8
    $region29: #{tpu_custom_call.1} parent=1 // pred_fallthru
      _
    // Predicated region
    $region30: #{tpu_custom_call.1} parent=1 // pred_check
      _
    $region31: #{tpu_custom_call.1} parent=1 // pred_check_branch
      %40 = sbr.rel (0) target = $region33
    $region32: #{tpu_custom_call.1} parent=1 // pred_region
      _
    $region33: #{tpu_custom_call.1} parent=1 // pred_fallthru
      _
    // Predicated region
    $region34: #{tpu_custom_call.1} parent=1 // pred_check
      _
    $region35: #{tpu_custom_call.1} parent=1 // pred_check_branch
      %42 = sbr.rel (0) target = $region37
    $region36: #{tpu_custom_call.1} parent=1 // pred_region
      %43 = dma.done [#allocation3], 512
    $region37: #{tpu_custom_call.1} parent=1 // pred_fallthru
      _
    %v44 = vld [vmem:[%s0] sm:$0xff]
    %v45 = vld [vmem:[%s0 + $0x8] sm:$0xff]
    %v46 = vld [vmem:[%s0 + $0x10] sm:$0xff]
    %v47 = vld [vmem:[%s0 + $0x18] sm:$0xff]
    %v48 = vld [vmem:[%s1] sm:$0xff]
    %v49 = vld [vmem:[%s1 + $0x8] sm:$0xff]
    %v50 = vld [vmem:[%s1 + $0x10] sm:$0xff]
    %v51 = vld [vmem:[%s1 + $0x18] sm:$0xff]
    %v52 = vld [vmem:[%s1 + $0x20] sm:$0xff]
    %v53 = vld [vmem:[%s2] sm:$0x1]
    %v55 = vlaneseq
    %v56 = vshrl.u32 %v55, 7
    %v57 = vsub.s32 0, %v56
    %v58 = vrot.slane %v53, %v57
    %vm60 = vcmask 326656
    %v62 = vsel %vm60, %v44, 0
    %v65 = vsel %vm60, %v45, 0
    %v68 = vsel %vm60, %v46, 0
    %v71 = vsel %vm60, %v47, 0
    %73 = vmatprep.subr.mxu0 0.0
    %74 = vmatpush1.msra.mxu0 0.0
    %75 = vmatprep.subr.mxu0 0.0
    %76 = vmatpush1.msra.mxu0 0.0
    %77 = vmatprep.subr.mxu0 0.0
    %78 = vmatpush1.msra.mxu0 0.0
    %79 = vmatprep.subr.mxu0 0.0
    %80 = vmatpush1.msra.mxu0 0.0
    %81 = vmatprep.subr.mxu0 0.0
    %82 = vmatpush1.msra.mxu0 0.0
    %83 = vmatprep.subr.mxu0 0.0
    %84 = vmatpush1.msra.mxu0 0.0
    %85 = vmatprep.subr.mxu0 0.0
    %86 = vmatpush1.msra.mxu0 0.0
    %87 = vmatprep.subr.mxu0 0.0
    %88 = vmatpush1.msra.mxu0 0.0
    %89 = vmatprep.subr.mxu0 0.0
    %90 = vmatpush1.msra.mxu0 0.0
    %91 = vmatprep.subr.mxu0 0.0
    %92 = vmatpush1.msra.mxu0 0.0
    %93 = vmatprep.subr.mxu0 0.0
    %94 = vmatpush1.msra.mxu0 0.0
    %95 = vmatprep.subr.mxu0 0.0
    %96 = vmatpush1.msra.mxu0 %v52
    %97 = vmatprep.subr.mxu0 0.0
    %98 = vmatpush1.msra.mxu0 %v51
    %99 = vmatprep.subr.mxu0 0.0
    %100 = vmatpush1.msra.mxu0 %v50
    %101 = vmatprep.subr.mxu0 0.0
    %102 = vmatpush1.msra.mxu0 %v49
    %103 = vmatprep.subr.mxu0 0.0
    %104 = vmatpush1.msra.mxu0 %v48
    %105 = vmatprep.subr.mxu0 0.0
    %106 = vmatpush2.msra.mxu0 0.0
    %107 = vmatprep.subr.mxu0 0.0
    %108 = vmatpush2.msra.mxu0 0.0
    %109 = vmatprep.subr.mxu0 0.0
    %110 = vmatpush2.msra.mxu0 0.0
    %111 = vmatprep.subr.mxu0 0.0
    %112 = vmatpush2.msra.mxu0 0.0
    %113 = vmatprep.subr.mxu0 0.0
    %114 = vmatpush2.msra.mxu0 0.0
    %115 = vmatprep.subr.mxu0 0.0
    %116 = vmatpush2.msra.mxu0 0.0
    %117 = vmatprep.subr.mxu0 0.0
    %118 = vmatpush2.msra.mxu0 0.0
    %119 = vmatprep.subr.mxu0 0.0
    %120 = vmatpush2.msra.mxu0 0.0
    %121 = vmatprep.subr.mxu0 0.0
    %122 = vmatpush2.msra.mxu0 0.0
    %123 = vmatprep.subr.mxu0 0.0
    %124 = vmatpush2.msra.mxu0 0.0
    %125 = vmatprep.subr.mxu0 0.0
    %126 = vmatpush2.msra.mxu0 0.0
    %127 = vmatprep.subr.mxu0 0.0
    %128 = vmatpush2.msra.mxu0 0.0
    %129 = vmatprep.subr.mxu0 0.0
    %130 = vmatpush2.msra.mxu0 0.0
    %131 = vmatprep.subr.mxu0 0.0
    %132 = vmatpush2.msra.mxu0 0.0
    %133 = vmatprep.subr.mxu0 0.0
    %134 = vmatpush2.msra.mxu0 0.0
    %135 = vmatprep.subr.mxu0 0.0
    %136 = vmatpush2.msra.mxu0 0.0
    %137 = vmatprep.mubr.f32.mxu0 0.0
    %138 = vmatmul.mubr.f32.gmra.mxu0 %v62
    %v139 = vpop.f32.mrf.mxu0
    %v140 = vadd.f32 %v58, %v139
    %v141 = vpop.f32.mrf.mxu0
    %142 = vmatprep.mubr.f32.mxu0 0.0
    %143 = vmatmul.mubr.f32.gmra.mxu0 %v65
    %v144 = vpop.f32.mrf.mxu0
    %v145 = vadd.f32 %v58, %v144
    %v146 = vpop.f32.mrf.mxu0
    %147 = vmatprep.mubr.f32.mxu0 0.0
    %148 = vmatmul.mubr.f32.gmra.mxu0 %v68
    %v149 = vpop.f32.mrf.mxu0
    %v150 = vadd.f32 %v58, %v149
    %v151 = vpop.f32.mrf.mxu0
    %152 = vmatprep.mubr.f32.mxu0 0.0
    %153 = vmatmul.mubr.f32.gmra.mxu0 %v71
    %v154 = vpop.f32.mrf.mxu0
    %v155 = vadd.f32 %v58, %v154
    %v156 = vpop.f32.mrf.mxu0
    %157 = vdwg.mxu0
    %v158 = vld [vmem:[%s5] sm:$0xff]
    %v159 = vld [vmem:[%s5 + $0x8] sm:$0xff]
    %v160 = vld [vmem:[%s5 + $0x10] sm:$0xff]
    %v161 = vld [vmem:[%s5 + $0x18] sm:$0xff]
    %v162 = vld [vmem:[%s3] sm:$0x1]
    %v163 = vld [vmem:[%s4] sm:$0x1]
    %vm164 = vcmask 261120
    %v165 = vsel %vm164, %v140, 0.0
    %v166 = vsel %vm164, %v145, 0.0
    %v167 = vadd.f32 %v165, %v166
    %v168 = vrot.slane %v167, 4
    %v169 = vadd.f32 %v167, %v168
    %v170 = vrot.slane %v169, 2
    %v171 = vadd.f32 %v169, %v170
    %v172 = vrot.slane %v171, 1
    %v173 = vadd.f32 %v171, %v172
    %v175 = vsel %vm164, %v173, 0
    %177 = vmatprep.subr.mxu0 0.0
    %178 = vmatpush1.msra.mxu0 0.0
    %179 = vmatprep.subr.mxu0 0.0
    %180 = vmatpush1.msra.mxu0 0.0
    %181 = vmatprep.subr.mxu0 0.0
    %182 = vmatpush1.msra.mxu0 0.0
    %183 = vmatprep.subr.mxu0 0.0
    %184 = vmatpush1.msra.mxu0 0.0
    %185 = vmatprep.subr.mxu0 0.0
    %186 = vmatpush1.msra.mxu0 0.0
    %187 = vmatprep.subr.mxu0 0.0
    %188 = vmatpush1.msra.mxu0 0.0
    %189 = vmatprep.subr.mxu0 0.0
    %190 = vmatpush1.msra.mxu0 0.0
    %191 = vmatprep.subr.mxu0 0.0
    %192 = vmatpush1.msra.mxu0 0.0
    %193 = vmatprep.subr.mxu0 0.0
    %194 = vmatpush1.msra.mxu0 0.0
    %195 = vmatprep.subr.mxu0 0.0
    %196 = vmatpush1.msra.mxu0 0.0
    %197 = vmatprep.subr.mxu0 0.0
    %198 = vmatpush1.msra.mxu0 0.0
    %199 = vmatprep.subr.mxu0 0.0
    %200 = vmatpush1.msra.mxu0 0.0
    %201 = vmatprep.subr.mxu0 0.0
    %202 = vmatpush1.msra.mxu0 %v161
    %203 = vmatprep.subr.mxu0 0.0
    %204 = vmatpush1.msra.mxu0 %v160
    %205 = vmatprep.subr.mxu0 0.0
    %206 = vmatpush1.msra.mxu0 %v159
    %207 = vmatprep.subr.mxu0 0.0
    %208 = vmatpush1.msra.mxu0 %v158
    %209 = vmatprep.subr.mxu0 0.0
    %210 = vmatpush2.msra.mxu0 0.0
    %211 = vmatprep.subr.mxu0 0.0
    %212 = vmatpush2.msra.mxu0 0.0
    %213 = vmatprep.subr.mxu0 0.0
    %214 = vmatpush2.msra.mxu0 0.0
    %215 = vmatprep.subr.mxu0 0.0
    %216 = vmatpush2.msra.mxu0 0.0
    %217 = vmatprep.subr.mxu0 0.0
    %218 = vmatpush2.msra.mxu0 0.0
    %219 = vmatprep.subr.mxu0 0.0
    %220 = vmatpush2.msra.mxu0 0.0
    %221 = vmatprep.subr.mxu0 0.0
    %222 = vmatpush2.msra.mxu0 0.0
    %223 = vmatprep.subr.mxu0 0.0
    %224 = vmatpush2.msra.mxu0 0.0
    %225 = vmatprep.subr.mxu0 0.0
    %226 = vmatpush2.msra.mxu0 0.0
    %227 = vmatprep.subr.mxu0 0.0
    %228 = vmatpush2.msra.mxu0 0.0
    %229 = vmatprep.subr.mxu0 0.0
    %230 = vmatpush2.msra.mxu0 0.0
    %231 = vmatprep.subr.mxu0 0.0
    %232 = vmatpush2.msra.mxu0 0.0
    %233 = vmatprep.subr.mxu0 0.0
    %234 = vmatpush2.msra.mxu0 0.0
    %235 = vmatprep.subr.mxu0 0.0
    %236 = vmatpush2.msra.mxu0 0.0
    %237 = vmatprep.subr.mxu0 0.0
    %238 = vmatpush2.msra.mxu0 0.0
    %239 = vmatprep.subr.mxu0 0.0
    %240 = vmatpush2.msra.mxu0 0.0
    %241 = vmatprep.mubr.f32.mxu0 0.0
    %242 = vmatmul.mubr.f32.gmra.mxu0 %v175
    %v243 = vpop.f32.mrf.mxu0
    %v244 = vadd.f32 0.0, %v243
    %v245 = vpop.f32.mrf.mxu0
    %246 = vdwg.mxu0
    %v247 = vlaneseq
    %v248 = vshrl.u32 %v247, 7
    %v249 = vsub.s32 0, %v248
    %v250 = vrot.slane %v244, %v249
    %v251 = vsub.f32 %v140, %v250
    %v252 = vsub.f32 %v145, %v250
    %v253 = vmul.f32 %v251, %v251
    %v254 = vmul.f32 %v252, %v252
    %v255 = vsel %vm164, %v253, 0.0
    %v256 = vsel %vm164, %v254, 0.0
    %v257 = vadd.f32 %v255, %v256
    %v258 = vrot.slane %v257, 4
    %v259 = vadd.f32 %v257, %v258
    %v260 = vrot.slane %v259, 2
    %v261 = vadd.f32 %v259, %v260
    %v262 = vrot.slane %v261, 1
    %v263 = vadd.f32 %v261, %v262
    %v265 = vsel %vm164, %v263, 0
    %267 = vmatprep.subr.mxu0 0.0
    %268 = vmatpush1.msra.mxu0 0.0
    %269 = vmatprep.subr.mxu0 0.0
    %270 = vmatpush1.msra.mxu0 0.0
    %271 = vmatprep.subr.mxu0 0.0
    %272 = vmatpush1.msra.mxu0 0.0
    %273 = vmatprep.subr.mxu0 0.0
    %274 = vmatpush1.msra.mxu0 0.0
    %275 = vmatprep.subr.mxu0 0.0
    %276 = vmatpush1.msra.mxu0 0.0
    %277 = vmatprep.subr.mxu0 0.0
    %278 = vmatpush1.msra.mxu0 0.0
    %279 = vmatprep.subr.mxu0 0.0
    %280 = vmatpush1.msra.mxu0 0.0
    %281 = vmatprep.subr.mxu0 0.0
    %282 = vmatpush1.msra.mxu0 0.0
    %283 = vmatprep.subr.mxu0 0.0
    %284 = vmatpush1.msra.mxu0 0.0
    %285 = vmatprep.subr.mxu0 0.0
    %286 = vmatpush1.msra.mxu0 0.0
    %287 = vmatprep.subr.mxu0 0.0
    %288 = vmatpush1.msra.mxu0 0.0
    %289 = vmatprep.subr.mxu0 0.0
    %290 = vmatpush1.msra.mxu0 0.0
    %291 = vmatprep.subr.mxu0 0.0
    %292 = vmatpush1.msra.mxu0 %v161
    %293 = vmatprep.subr.mxu0 0.0
    %294 = vmatpush1.msra.mxu0 %v160
    %295 = vmatprep.subr.mxu0 0.0
    %296 = vmatpush1.msra.mxu0 %v159
    %297 = vmatprep.subr.mxu0 0.0
    %298 = vmatpush1.msra.mxu0 %v158
    %299 = vmatprep.subr.mxu0 0.0
    %300 = vmatpush2.msra.mxu0 0.0
    %301 = vmatprep.subr.mxu0 0.0
    %302 = vmatpush2.msra.mxu0 0.0
    %303 = vmatprep.subr.mxu0 0.0
    %304 = vmatpush2.msra.mxu0 0.0
    %305 = vmatprep.subr.mxu0 0.0
    %306 = vmatpush2.msra.mxu0 0.0
    %307 = vmatprep.subr.mxu0 0.0
    %308 = vmatpush2.msra.mxu0 0.0
    %309 = vmatprep.subr.mxu0 0.0
    %310 = vmatpush2.msra.mxu0 0.0
    %311 = vmatprep.subr.mxu0 0.0
    %312 = vmatpush2.msra.mxu0 0.0
    %313 = vmatprep.subr.mxu0 0.0
    %314 = vmatpush2.msra.mxu0 0.0
    %315 = vmatprep.subr.mxu0 0.0
    %316 = vmatpush2.msra.mxu0 0.0
    %317 = vmatprep.subr.mxu0 0.0
    %318 = vmatpush2.msra.mxu0 0.0
    %319 = vmatprep.subr.mxu0 0.0
    %320 = vmatpush2.msra.mxu0 0.0
    %321 = vmatprep.subr.mxu0 0.0
    %322 = vmatpush2.msra.mxu0 0.0
    %323 = vmatprep.subr.mxu0 0.0
    %324 = vmatpush2.msra.mxu0 0.0
    %325 = vmatprep.subr.mxu0 0.0
    %326 = vmatpush2.msra.mxu0 0.0
    %327 = vmatprep.subr.mxu0 0.0
    %328 = vmatpush2.msra.mxu0 0.0
    %329 = vmatprep.subr.mxu0 0.0
    %330 = vmatpush2.msra.mxu0 0.0
    %331 = vmatprep.mubr.f32.mxu0 0.0
    %332 = vmatmul.mubr.f32.gmra.mxu0 %v265
    %v333 = vpop.f32.mrf.mxu0
    %v334 = vadd.f32 1e-05, %v333
    %v335 = vpop.f32.mrf.mxu0
    %336 = vdwg.mxu0
    %v337 = vrsqrt.pop %v334
    %v338 = vlaneseq
    %v339 = vshrl.u32 %v338, 7
    %v340 = vsub.s32 0, %v339
    %v341 = vrot.slane %v337, %v340
    %v342 = vmul.f32 %v251, %v341
    %v343 = vmul.f32 %v252, %v341
    %v345 = vlaneseq
    %v346 = vshrl.u32 %v345, 7
    %v347 = vsub.s32 0, %v346
    %v348 = vrot.slane %v162, %v347
    %v350 = vmul.f32 %v342, %v348
    %v351 = vmul.f32 %v343, %v348
    %v353 = vlaneseq
    %v354 = vshrl.u32 %v353, 7
    %v355 = vsub.s32 0, %v354
    %v356 = vrot.slane %v163, %v355
    %v358 = vadd.f32 %v350, %v356
    %v359 = vadd.f32 %v351, %v356
    %v360 = vmax.f32 %v358, 0.0
    %v361 = vmax.f32 %v359, 0.0
    %v362 = vsel %vm164, %v150, 0.0
    %v363 = vsel %vm164, %v155, 0.0
    %v364 = vadd.f32 %v362, %v363
    %v365 = vrot.slane %v364, 4
    %v366 = vadd.f32 %v364, %v365
    %v367 = vrot.slane %v366, 2
    %v368 = vadd.f32 %v366, %v367
    %v369 = vrot.slane %v368, 1
    %v370 = vadd.f32 %v368, %v369
    %v372 = vsel %vm164, %v370, 0
    %374 = vmatprep.subr.mxu0 0.0
    %375 = vmatpush1.msra.mxu0 0.0
    %376 = vmatprep.subr.mxu0 0.0
    %377 = vmatpush1.msra.mxu0 0.0
    %378 = vmatprep.subr.mxu0 0.0
    %379 = vmatpush1.msra.mxu0 0.0
    %380 = vmatprep.subr.mxu0 0.0
    %381 = vmatpush1.msra.mxu0 0.0
    %382 = vmatprep.subr.mxu0 0.0
    %383 = vmatpush1.msra.mxu0 0.0
    %384 = vmatprep.subr.mxu0 0.0
    %385 = vmatpush1.msra.mxu0 0.0
    %386 = vmatprep.subr.mxu0 0.0
    %387 = vmatpush1.msra.mxu0 0.0
    %388 = vmatprep.subr.mxu0 0.0
    %389 = vmatpush1.msra.mxu0 0.0
    %390 = vmatprep.subr.mxu0 0.0
    %391 = vmatpush1.msra.mxu0 0.0
    %392 = vmatprep.subr.mxu0 0.0
    %393 = vmatpush1.msra.mxu0 0.0
    %394 = vmatprep.subr.mxu0 0.0
    %395 = vmatpush1.msra.mxu0 0.0
    %396 = vmatprep.subr.mxu0 0.0
    %397 = vmatpush1.msra.mxu0 0.0
    %398 = vmatprep.subr.mxu0 0.0
    %399 = vmatpush1.msra.mxu0 %v161
    %400 = vmatprep.subr.mxu0 0.0
    %401 = vmatpush1.msra.mxu0 %v160
    %402 = vmatprep.subr.mxu0 0.0
    %403 = vmatpush1.msra.mxu0 %v159
    %404 = vmatprep.subr.mxu0 0.0
    %405 = vmatpush1.msra.mxu0 %v158
    %406 = vmatprep.subr.mxu0 0.0
    %407 = vmatpush2.msra.mxu0 0.0
    %408 = vmatprep.subr.mxu0 0.0
    %409 = vmatpush2.msra.mxu0 0.0
    %410 = vmatprep.subr.mxu0 0.0
    %411 = vmatpush2.msra.mxu0 0.0
    %412 = vmatprep.subr.mxu0 0.0
    %413 = vmatpush2.msra.mxu0 0.0
    %414 = vmatprep.subr.mxu0 0.0
    %415 = vmatpush2.msra.mxu0 0.0
    %416 = vmatprep.subr.mxu0 0.0
    %417 = vmatpush2.msra.mxu0 0.0
    %418 = vmatprep.subr.mxu0 0.0
    %419 = vmatpush2.msra.mxu0 0.0
    %420 = vmatprep.subr.mxu0 0.0
    %421 = vmatpush2.msra.mxu0 0.0
    %422 = vmatprep.subr.mxu0 0.0
    %423 = vmatpush2.msra.mxu0 0.0
    %424 = vmatprep.subr.mxu0 0.0
    %425 = vmatpush2.msra.mxu0 0.0
    %426 = vmatprep.subr.mxu0 0.0
    %427 = vmatpush2.msra.mxu0 0.0
    %428 = vmatprep.subr.mxu0 0.0
    %429 = vmatpush2.msra.mxu0 0.0
    %430 = vmatprep.subr.mxu0 0.0
    %431 = vmatpush2.msra.mxu0 0.0
    %432 = vmatprep.subr.mxu0 0.0
    %433 = vmatpush2.msra.mxu0 0.0
    %434 = vmatprep.subr.mxu0 0.0
    %435 = vmatpush2.msra.mxu0 0.0
    %436 = vmatprep.subr.mxu0 0.0
    %437 = vmatpush2.msra.mxu0 0.0
    %438 = vmatprep.mubr.f32.mxu0 0.0
    %439 = vmatmul.mubr.f32.gmra.mxu0 %v372
    %v440 = vpop.f32.mrf.mxu0
    %v441 = vadd.f32 0.0, %v440
    %v442 = vpop.f32.mrf.mxu0
    %443 = vdwg.mxu0
    %v444 = vlaneseq
    %v445 = vshrl.u32 %v444, 7
    %v446 = vsub.s32 0, %v445
    %v447 = vrot.slane %v441, %v446
    %v448 = vsub.f32 %v150, %v447
    %v449 = vsub.f32 %v155, %v447
    %v450 = vmul.f32 %v448, %v448
    %v451 = vmul.f32 %v449, %v449
    %v452 = vsel %vm164, %v450, 0.0
    %v453 = vsel %vm164, %v451, 0.0
    %v454 = vadd.f32 %v452, %v453
    %v455 = vrot.slane %v454, 4
    %v456 = vadd.f32 %v454, %v455
    %v457 = vrot.slane %v456, 2
    %v458 = vadd.f32 %v456, %v457
    %v459 = vrot.slane %v458, 1
    %v460 = vadd.f32 %v458, %v459
    %v462 = vsel %vm164, %v460, 0
    %464 = vmatprep.subr.mxu0 0.0
    %465 = vmatpush1.msra.mxu0 0.0
    %466 = vmatprep.subr.mxu0 0.0
    %467 = vmatpush1.msra.mxu0 0.0
    %468 = vmatprep.subr.mxu0 0.0
    %469 = vmatpush1.msra.mxu0 0.0
    %470 = vmatprep.subr.mxu0 0.0
    %471 = vmatpush1.msra.mxu0 0.0
    %472 = vmatprep.subr.mxu0 0.0
    %473 = vmatpush1.msra.mxu0 0.0
    %474 = vmatprep.subr.mxu0 0.0
    %475 = vmatpush1.msra.mxu0 0.0
    %476 = vmatprep.subr.mxu0 0.0
    %477 = vmatpush1.msra.mxu0 0.0
    %478 = vmatprep.subr.mxu0 0.0
    %479 = vmatpush1.msra.mxu0 0.0
    %480 = vmatprep.subr.mxu0 0.0
    %481 = vmatpush1.msra.mxu0 0.0
    %482 = vmatprep.subr.mxu0 0.0
    %483 = vmatpush1.msra.mxu0 0.0
    %484 = vmatprep.subr.mxu0 0.0
    %485 = vmatpush1.msra.mxu0 0.0
    %486 = vmatprep.subr.mxu0 0.0
    %487 = vmatpush1.msra.mxu0 0.0
    %488 = vmatprep.subr.mxu0 0.0
    %489 = vmatpush1.msra.mxu0 %v161
    %490 = vmatprep.subr.mxu0 0.0
    %491 = vmatpush1.msra.mxu0 %v160
    %492 = vmatprep.subr.mxu0 0.0
    %493 = vmatpush1.msra.mxu0 %v159
    %494 = vmatprep.subr.mxu0 0.0
    %495 = vmatpush1.msra.mxu0 %v158
    %496 = vmatprep.subr.mxu0 0.0
    %497 = vmatpush2.msra.mxu0 0.0
    %498 = vmatprep.subr.mxu0 0.0
    %499 = vmatpush2.msra.mxu0 0.0
    %500 = vmatprep.subr.mxu0 0.0
    %501 = vmatpush2.msra.mxu0 0.0
    %502 = vmatprep.subr.mxu0 0.0
    %503 = vmatpush2.msra.mxu0 0.0
    %504 = vmatprep.subr.mxu0 0.0
    %505 = vmatpush2.msra.mxu0 0.0
    %506 = vmatprep.subr.mxu0 0.0
    %507 = vmatpush2.msra.mxu0 0.0
    %508 = vmatprep.subr.mxu0 0.0
    %509 = vmatpush2.msra.mxu0 0.0
    %510 = vmatprep.subr.mxu0 0.0
    %511 = vmatpush2.msra.mxu0 0.0
    %512 = vmatprep.subr.mxu0 0.0
    %513 = vmatpush2.msra.mxu0 0.0
    %514 = vmatprep.subr.mxu0 0.0
    %515 = vmatpush2.msra.mxu0 0.0
    %516 = vmatprep.subr.mxu0 0.0
    %517 = vmatpush2.msra.mxu0 0.0
    %518 = vmatprep.subr.mxu0 0.0
    %519 = vmatpush2.msra.mxu0 0.0
    %520 = vmatprep.subr.mxu0 0.0
    %521 = vmatpush2.msra.mxu0 0.0
    %522 = vmatprep.subr.mxu0 0.0
    %523 = vmatpush2.msra.mxu0 0.0
    %524 = vmatprep.subr.mxu0 0.0
    %525 = vmatpush2.msra.mxu0 0.0
    %526 = vmatprep.subr.mxu0 0.0
    %527 = vmatpush2.msra.mxu0 0.0
    %528 = vmatprep.mubr.f32.mxu0 0.0
    %529 = vmatmul.mubr.f32.gmra.mxu0 %v462
    %v530 = vpop.f32.mrf.mxu0
    %v531 = vadd.f32 1e-05, %v530
    %v532 = vpop.f32.mrf.mxu0
    %533 = vdwg.mxu0
    %v534 = vrsqrt.pop %v531
    %v535 = vlaneseq
    %v536 = vshrl.u32 %v535, 7
    %v537 = vsub.s32 0, %v536
    %v538 = vrot.slane %v534, %v537
    %v539 = vmul.f32 %v448, %v538
    %v540 = vmul.f32 %v449, %v538
    %v541 = vmul.f32 %v539, %v348
    %v542 = vmul.f32 %v540, %v348
    %v543 = vadd.f32 %v541, %v356
    %v544 = vadd.f32 %v542, %v356
    %v545 = vmax.f32 %v543, 0.0
    %v546 = vmax.f32 %v544, 0.0
    %v547 = vld [vmem:[#allocation2] sm:$0xff]
    %v548 = vld [vmem:[#allocation2 + $0x8] sm:$0xff]
    %v549 = vld [vmem:[#allocation2 + $0x10] sm:$0xff]
    %v550 = vld [vmem:[#allocation2 + $0x18] sm:$0xff]
    %v551 = vld [vmem:[%s7] sm:$0x1]
    %v553 = vlaneseq
    %v554 = vshrl.u32 %v553, 7
    %v555 = vsub.s32 0, %v554
    %v556 = vrot.slane %v551, %v555
    %v559 = vsel %vm164, %v360, 0
    %v562 = vsel %vm164, %v361, 0
    %v565 = vsel %vm164, %v545, 0
    %v568 = vsel %vm164, %v546, 0
    %570 = vmatprep.subr.mxu0 0.0
    %571 = vmatpush1.msra.mxu0 0.0
    %572 = vmatprep.subr.mxu0 0.0
    %573 = vmatpush1.msra.mxu0 0.0
    %574 = vmatprep.subr.mxu0 0.0
    %575 = vmatpush1.msra.mxu0 0.0
    %576 = vmatprep.subr.mxu0 0.0
    %577 = vmatpush1.msra.mxu0 0.0
    %578 = vmatprep.subr.mxu0 0.0
    %579 = vmatpush1.msra.mxu0 0.0
    %580 = vmatprep.subr.mxu0 0.0
    %581 = vmatpush1.msra.mxu0 0.0
    %582 = vmatprep.subr.mxu0 0.0
    %583 = vmatpush1.msra.mxu0 0.0
    %584 = vmatprep.subr.mxu0 0.0
    %585 = vmatpush1.msra.mxu0 0.0
    %586 = vmatprep.subr.mxu0 0.0
    %587 = vmatpush1.msra.mxu0 0.0
    %588 = vmatprep.subr.mxu0 0.0
    %589 = vmatpush1.msra.mxu0 0.0
    %590 = vmatprep.subr.mxu0 0.0
    %591 = vmatpush1.msra.mxu0 0.0
    %592 = vmatprep.subr.mxu0 0.0
    %593 = vmatpush1.msra.mxu0 0.0
    %594 = vmatprep.subr.mxu0 0.0
    %595 = vmatpush1.msra.mxu0 %v550
    %596 = vmatprep.subr.mxu0 0.0
    %597 = vmatpush1.msra.mxu0 %v549
    %598 = vmatprep.subr.mxu0 0.0
    %599 = vmatpush1.msra.mxu0 %v548
    %600 = vmatprep.subr.mxu0 0.0
    %601 = vmatpush1.msra.mxu0 %v547
    %602 = vmatprep.subr.mxu0 0.0
    %603 = vmatpush2.msra.mxu0 0.0
    %604 = vmatprep.subr.mxu0 0.0
    %605 = vmatpush2.msra.mxu0 0.0
    %606 = vmatprep.subr.mxu0 0.0
    %607 = vmatpush2.msra.mxu0 0.0
    %608 = vmatprep.subr.mxu0 0.0
    %609 = vmatpush2.msra.mxu0 0.0
    %610 = vmatprep.subr.mxu0 0.0
    %611 = vmatpush2.msra.mxu0 0.0
    %612 = vmatprep.subr.mxu0 0.0
    %613 = vmatpush2.msra.mxu0 0.0
    %614 = vmatprep.subr.mxu0 0.0
    %615 = vmatpush2.msra.mxu0 0.0
    %616 = vmatprep.subr.mxu0 0.0
    %617 = vmatpush2.msra.mxu0 0.0
    %618 = vmatprep.subr.mxu0 0.0
    %619 = vmatpush2.msra.mxu0 0.0
    %620 = vmatprep.subr.mxu0 0.0
    %621 = vmatpush2.msra.mxu0 0.0
    %622 = vmatprep.subr.mxu0 0.0
    %623 = vmatpush2.msra.mxu0 0.0
    %624 = vmatprep.subr.mxu0 0.0
    %625 = vmatpush2.msra.mxu0 0.0
    %626 = vmatprep.subr.mxu0 0.0
    %627 = vmatpush2.msra.mxu0 0.0
    %628 = vmatprep.subr.mxu0 0.0
    %629 = vmatpush2.msra.mxu0 0.0
    %630 = vmatprep.subr.mxu0 0.0
    %631 = vmatpush2.msra.mxu0 0.0
    %632 = vmatprep.subr.mxu0 0.0
    %633 = vmatpush2.msra.mxu0 0.0
    %634 = vmatprep.mubr.f32.mxu0 0.0
    %635 = vmatmul.mubr.f32.gmra.mxu0 %v559
    %v636 = vpop.f32.mrf.mxu0
    %v637 = vadd.f32 %v556, %v636
    %v638 = vpop.f32.mrf.mxu0
    %639 = vmatprep.mubr.f32.mxu0 0.0
    %640 = vmatmul.mubr.f32.gmra.mxu0 %v562
    %v641 = vpop.f32.mrf.mxu0
    %v642 = vadd.f32 %v556, %v641
    %v643 = vpop.f32.mrf.mxu0
    %644 = vmatprep.mubr.f32.mxu0 0.0
    %645 = vmatmul.mubr.f32.gmra.mxu0 %v565
    %v646 = vpop.f32.mrf.mxu0
    %v647 = vadd.f32 %v556, %v646
    %v648 = vpop.f32.mrf.mxu0
    %649 = vmatprep.mubr.f32.mxu0 0.0
    %650 = vmatmul.mubr.f32.gmra.mxu0 %v568
    %v651 = vpop.f32.mrf.mxu0
    %v652 = vadd.f32 %v556, %v651
    %v653 = vpop.f32.mrf.mxu0
    %654 = vdwg.mxu0
    %655 = vst [vmem:[#allocation5] sm:$0xff] %v637
    %656 = vst [vmem:[#allocation5 + $0x8] sm:$0xff] %v642
    %657 = vst [vmem:[#allocation5 + $0x10] sm:$0xff] %v647
    %658 = vst [vmem:[#allocation5 + $0x18] sm:$0xff] %v652
    // Predicated region
    $region38: #{tpu_custom_call.1} parent=1 // pred_check
      _
    $region39: #{tpu_custom_call.1} parent=1 // pred_check_branch
      %660 = sbr.rel (0) target = $region41
    $region40: #{tpu_custom_call.1} parent=1 // pred_region
      %s662 = ssub.s32 512, 512
      %663 = vsyncadd [#allocation4], %s662
      %s664 = sshll.u32 [#allocation5], 4
      %s665 = int_to_ptr.vmem [resolvable:$true] %s664
      %670 = dma.vmem_to_hbm [thread:$0]  %s665, 512, %s8, [#allocation4], 128, 128, 8
    $region41: #{tpu_custom_call.1} parent=1 // pred_fallthru
      _
    // Predicated region
    $region42: #{tpu_custom_call.1} parent=1 // pred_check
      _
    $region43: #{tpu_custom_call.1} parent=1 // pred_check_branch
      %672 = sbr.rel (0) target = $region45
    $region44: #{tpu_custom_call.1} parent=1 // pred_region
      %673 = dma.done [#allocation4], 512
    $region45: #{tpu_custom_call.1} parent=1 // pred_fallthru
      _
    %674 = vsyncpa [#allocation3], 1
    %675 = vsyncpa [#allocation4], 1

</llo_original>
